<compile_context>
chip_gen: v7x
topology: tpu7x:2x2x1
jax: 0.10.0
libtpu: 0.0.40
codegen_flags: <defaults>
</compile_context>

<pallas_src>
import functools

import jax
import jax.numpy as jnp
from jax.experimental import pallas as pl
from jax.experimental.pallas import tpu as pltpu

EMBED_DIM = 256


def _proofreader_kernel(tok_ref,     # (B, T)      int32  VMEM  raw token ids
                        table_ref,   # (2V, 2H)    f32    VMEM  stacked projected-embedding table
                        w_ref,       # (2H, 2H+O)  bf16   VMEM  [ blockdiag(W_hh_f, W_hh_b) | fc_w ]
                        fc_b_ref,    # (1, O)      f32
                        dist_ref,    # (B, O)      f32
                        out_ref,     # (B, O)      f32
                        *, T, V, H, S, fwd_delay, bwd_delay):
    B = tok_ref.shape[0]
    H2 = 2 * H

    whh = w_ref[:, :H2]          # (2H, 2H) bf16, strictly block-diagonal
    fc_w = w_ref[:, H2:]         # (2H, O)  bf16
    table = table_ref[...]       # (2V, 2H) f32

    # Lane iota over the stacked one-hot width: columns [0, V) select the forward token's
    # row (whose backward half is zero), columns [V, 2V) select the backward token's row.
    iota = jax.lax.broadcasted_iota(jnp.int32, (B, 2 * V), 1)

    # Fused bidirectional recurrence: h = [h_fwd | h_bwd].  A direction whose chain has
    # not started yet gets an all-zero one-hot -> zero input -> tanh(0) = 0, so it stays
    # exactly at its initial state (valid only because W_hh is block-diagonal and all
    # biases live in the table).
    h = jnp.zeros((B, H2), jnp.float32)
    # TODO(synk): if a bundle dump shows Mosaic re-pushing the W_hh RHS every step, switch
    # to pltpu.matmul_push_rhs / matmul_acc_lhs / matmul_pop to keep it MXU-resident.
    for s in range(S):  # static unroll; S = max(3, T-2) is small. Use fori_loop(unroll=True) if T grows.
        sel = None
        if s >= fwd_delay:                       # forward chain active (needs t = 0..2)
            cf = s - fwd_delay
            sel = iota == tok_ref[:, cf:cf + 1]
        if s >= bwd_delay:                       # backward chain active (needs t = T-1..2)
            cb = T - 1 - (s - bwd_delay)
            m = iota == (tok_ref[:, cb:cb + 1] + V)
            sel = m if sel is None else (sel | m)
        # In-kernel embedding + input-projection gather via one-hot matmul.  Independent
        # of h, so it pipelines under the serial recurrence dot below.
        u_s = jnp.dot(sel.astype(jnp.float32), table,
                      preferred_element_type=jnp.float32)                 # (B, 2H) f32
        h = jnp.tanh(u_s + jnp.dot(h.astype(jnp.bfloat16), whh,
                                   preferred_element_type=jnp.float32))

    # h == [h_fwd(t=2) | h_bwd(t=2)] == out[:, 2, :]
    # Dropout(p=0.5) is identity in eval mode.
    # TODO(synk): training-mode dropout mask/scale is not implemented.
    logits = jnp.dot(h.astype(jnp.bfloat16), fc_w,
                     preferred_element_type=jnp.float32) + fc_b_ref[...]
    out_ref[...] = logits * dist_ref[...]


def prepare_params(params):
    """One-time weight preprocessing (off the inference hot path)."""
    H = params["whh_f"].shape[0]
    V = params["embedding"].shape[0]   # vocab == output_size for this module
    # Stacked projected-embedding table:
    #   row t     (t in [0,V))  -> [ emb[t] @ wih_f + b_f | 0 ]
    #   row V + t               -> [ 0 | emb[t] @ wih_b + b_b ]
    # Keeping it f32 avoids adding bf16 rounding on the per-step inputs.
    proj_f = params["embedding"] @ params["wih_f"] + params["b_f"]        # (V, H)
    proj_b = params["embedding"] @ params["wih_b"] + params["b_b"]        # (V, H)
    table = jnp.zeros((2 * V, 2 * H), jnp.float32)
    table = table.at[:V, :H].set(proj_f)
    table = table.at[V:, H:].set(proj_b)
    # Block-diagonal recurrent weight so one dot serves both directions.
    # NOTE: must stay STRICTLY block-diagonal and bias-free -- the delayed-chain trick in
    # the kernel relies on it (idle halves must remain exactly 0).
    whh_blk = jnp.zeros((2 * H, 2 * H), jnp.float32)
    whh_blk = whh_blk.at[:H, :H].set(params["whh_f"])
    whh_blk = whh_blk.at[H:, H:].set(params["whh_b"])
    # Pack recurrent + fc weights into one bf16 MXU operand (one DMA instead of two).
    w_comb = jnp.concatenate([whh_blk, params["fc_w"]], axis=1).astype(jnp.bfloat16)
    return {
        "table": table,                                   # (2V, 2H) f32
        "w_comb": w_comb,                                 # (2H, 2H+O) bf16
        "fc_b": params["fc_b"].astype(jnp.float32),       # (1, O) f32
    }


def proofreader_forward(prep, x_tokens, distance):
    B, T = x_tokens.shape
    assert T >= 3, "forward slices out[:, 2, :]"
    V = prep["table"].shape[0] // 2
    H2 = prep["table"].shape[1]
    H = H2 // 2
    O = prep["w_comb"].shape[1] - H2

    # Fused chain length and per-direction start delays (both directions end on t=2).
    S = max(3, T - 2)
    fwd_delay, bwd_delay = S - 3, S - (T - 2)

    kernel = functools.partial(_proofreader_kernel, T=T, V=V, H=H, S=S,
                               fwd_delay=fwd_delay, bwd_delay=bwd_delay)

    flops = S * (2 * B * (2 * V) * H2 + 2 * B * H2 * H2) + 2 * B * H2 * O
    transcendentals = S * B * H2
    bytes_accessed = (x_tokens.size * 4 + prep["table"].size * 4 +
                      prep["w_comb"].size * 2 + prep["fc_b"].size * 4 +
                      distance.size * 4 + B * O * 4)

    vmem = pl.BlockSpec(memory_space=pltpu.MemorySpace.VMEM)
    return pl.pallas_call(
        kernel,
        out_shape=jax.ShapeDtypeStruct((B, O), jnp.float32),
        in_specs=[vmem] * 5,
        out_specs=vmem,
        cost_estimate=pl.CostEstimate(flops=flops,
                                      transcendentals=transcendentals,
                                      bytes_accessed=bytes_accessed),
    )(x_tokens.astype(jnp.int32), prep["table"], prep["w_comb"], prep["fc_b"],
      distance.astype(jnp.float32))


def reference_forward(params, x_tokens, distance):
    """Pure-JAX f32 reference reproducing the PyTorch forward (eval-mode dropout)."""
    emb = jnp.take(params["embedding"], x_tokens, axis=0).astype(jnp.float32)
    B, T, _ = emb.shape
    H = params["whh_f"].shape[0]

    h = jnp.zeros((B, H), jnp.float32)
    fwd = []
    for t in range(T):
        h = jnp.tanh(emb[:, t] @ params["wih_f"] + h @ params["whh_f"] + params["b_f"])
        fwd.append(h)

    h = jnp.zeros((B, H), jnp.float32)
    bwd = [None] * T
    for t in range(T - 1, -1, -1):
        h = jnp.tanh(emb[:, t] @ params["wih_b"] + h @ params["whh_b"] + params["b_b"])
        bwd[t] = h

    out_t2 = jnp.concatenate([fwd[2], bwd[2]], axis=-1)           # out[:, 2, :]
    logits = out_t2 @ params["fc_w"] + params["fc_b"]
    return logits * distance


def init_params(key, output_size, hidden_dim):
    ks = jax.random.split(key, 9)
    H, E, O = hidden_dim, EMBED_DIM, output_size
    s_rnn = 1.0 / jnp.sqrt(H)      # PyTorch nn.RNN init scale
    s_fc = 1.0 / jnp.sqrt(2 * H)   # PyTorch nn.Linear init scale
    u = lambda k, shape, s: jax.random.uniform(k, shape, jnp.float32, -s, s)
    return {
        "embedding": jax.random.normal(ks[0], (O, E), jnp.float32),
        "wih_f": u(ks[1], (E, H), s_rnn),
        "whh_f": u(ks[2], (H, H), s_rnn),
        "b_f":   u(ks[3], (1, H), s_rnn),   # b_ih + b_hh folded into one bias
        "wih_b": u(ks[4], (E, H), s_rnn),
        "whh_b": u(ks[5], (H, H), s_rnn),
        "b_b":   u(ks[6], (1, H), s_rnn),
        "fc_w":  u(ks[7], (2 * H, O), s_fc),
        "fc_b":  u(ks[8], (1, O), s_fc),
    }


if __name__ == "__main__":
    # Small shapes consistent with the module: batch=2, seq=8, hidden_dim=32, output_size=64.
    B, T, H, O = 2, 8, 32, 64
    key = jax.random.PRNGKey(0)
    k_par, k_tok, k_dist = jax.random.split(key, 3)

    params = init_params(k_par, output_size=O, hidden_dim=H)
    x_tokens = jax.random.randint(k_tok, (B, T), 0, O, dtype=jnp.int32)
    distance = jax.random.uniform(k_dist, (B, O), jnp.float32, 0.5, 1.5)

    prep = prepare_params(params)                 # one-time weight preprocessing
    forward = jax.jit(proofreader_forward)

    out = forward(prep, x_tokens, distance)
    out = jax.block_until_ready(out)

    ref = reference_forward(params, x_tokens, distance)
    assert out.shape == (B, O)
    assert jnp.allclose(out, ref, rtol=1e-2, atol=1e-2), "kernel mismatch vs reference"

    print("KERNEL_OK")
</pallas_src>

<mosaic_0001>
module attributes {stable_mosaic.version = 11 : i64} {
  func.func @_proofreader_kernel(%arg0: memref<2x8xi32, #tpu.memory_space<vmem>>, %arg1: memref<128x64xf32, #tpu.memory_space<vmem>>, %arg2: memref<64x128xbf16, #tpu.memory_space<vmem>>, %arg3: memref<1x64xf32, #tpu.memory_space<vmem>>, %arg4: memref<2x64xf32, #tpu.memory_space<vmem>>, %arg5: memref<2x64xf32, #tpu.memory_space<vmem>>) attributes {dimension_semantics = [], scalar_prefetch = 0 : i64, scratch_operands = 0 : i64, tpu.core_type = #tpu.core_type<tc>} {
    %c0 = arith.constant 0 : index
    %c0_0 = arith.constant 0 : index
    %0 = vector.load %arg2[%c0, %c0_0] : memref<64x128xbf16, #tpu.memory_space<vmem>>, vector<64x64xbf16>
    %c0_1 = arith.constant 0 : index
    %c64 = arith.constant 64 : index
    %1 = vector.load %arg2[%c0_1, %c64] : memref<64x128xbf16, #tpu.memory_space<vmem>>, vector<64x64xbf16>
    %c0_2 = arith.constant 0 : index
    %c0_3 = arith.constant 0 : index
    %2 = vector.load %arg1[%c0_2, %c0_3] : memref<128x64xf32, #tpu.memory_space<vmem>>, vector<128x64xf32>
    %3 = tpu.iota {dimensions = array<i32: 1>} : vector<2x128xi32>
    %cst = arith.constant 0.000000e+00 : f32
    %4 = vector.broadcast %cst : f32 to vector<2x64xf32>
    %c0_4 = arith.constant 0 : index
    %c7 = arith.constant 7 : index
    %5 = vector.load %arg0[%c0_4, %c7] : memref<2x8xi32, #tpu.memory_space<vmem>>, vector<2x1xi32>
    %c64_i32 = arith.constant 64 : i32
    %6 = vector.broadcast %c64_i32 : i32 to vector<2x1xi32>
    %7 = arith.addi %5, %6 : vector<2x1xi32>
    %8 = vector.broadcast %7 : vector<2x1xi32> to vector<2x128xi32>
    %9 = arith.cmpi eq, %3, %8 : vector<2x128xi32>
    %10 = arith.extui %9 : vector<2x128xi1> to vector<2x128xi32>
    %11 = arith.sitofp %10 : vector<2x128xi32> to vector<2x128xf32>
    %cst_5 = arith.constant dense<0.000000e+00> : vector<2x64xf32>
    %12 = tpu.matmul %11, %2, %cst_5 {dimension_numbers = #tpu.dot_dimension_numbers<[1], [0], [0], [1], [0, 0, 1, 1], [], []>} : vector<2x128xf32>, vector<128x64xf32>, vector<2x64xf32> -> vector<2x64xf32>
    %13 = arith.truncf %4 : vector<2x64xf32> to vector<2x64xbf16>
    %cst_6 = arith.constant dense<0.000000e+00> : vector<2x64xf32>
    %14 = tpu.matmul %13, %0, %cst_6 {dimension_numbers = #tpu.dot_dimension_numbers<[1], [0], [0], [1], [0, 0, 1, 1], [], []>} : vector<2x64xbf16>, vector<64x64xbf16>, vector<2x64xf32> -> vector<2x64xf32>
    %15 = arith.addf %12, %14 : vector<2x64xf32>
    %16 = math.tanh %15 : vector<2x64xf32>
    %c0_7 = arith.constant 0 : index
    %c6 = arith.constant 6 : index
    %17 = vector.load %arg0[%c0_7, %c6] : memref<2x8xi32, #tpu.memory_space<vmem>>, vector<2x1xi32>
    %c64_i32_8 = arith.constant 64 : i32
    %18 = vector.broadcast %c64_i32_8 : i32 to vector<2x1xi32>
    %19 = arith.addi %17, %18 : vector<2x1xi32>
    %20 = vector.broadcast %19 : vector<2x1xi32> to vector<2x128xi32>
    %21 = arith.cmpi eq, %3, %20 : vector<2x128xi32>
    %22 = arith.extui %21 : vector<2x128xi1> to vector<2x128xi32>
    %23 = arith.sitofp %22 : vector<2x128xi32> to vector<2x128xf32>
    %cst_9 = arith.constant dense<0.000000e+00> : vector<2x64xf32>
    %24 = tpu.matmul %23, %2, %cst_9 {dimension_numbers = #tpu.dot_dimension_numbers<[1], [0], [0], [1], [0, 0, 1, 1], [], []>} : vector<2x128xf32>, vector<128x64xf32>, vector<2x64xf32> -> vector<2x64xf32>
    %25 = arith.truncf %16 : vector<2x64xf32> to vector<2x64xbf16>
    %cst_10 = arith.constant dense<0.000000e+00> : vector<2x64xf32>
    %26 = tpu.matmul %25, %0, %cst_10 {dimension_numbers = #tpu.dot_dimension_numbers<[1], [0], [0], [1], [0, 0, 1, 1], [], []>} : vector<2x64xbf16>, vector<64x64xbf16>, vector<2x64xf32> -> vector<2x64xf32>
    %27 = arith.addf %24, %26 : vector<2x64xf32>
    %28 = math.tanh %27 : vector<2x64xf32>
    %c0_11 = arith.constant 0 : index
    %c5 = arith.constant 5 : index
    %29 = vector.load %arg0[%c0_11, %c5] : memref<2x8xi32, #tpu.memory_space<vmem>>, vector<2x1xi32>
    %c64_i32_12 = arith.constant 64 : i32
    %30 = vector.broadcast %c64_i32_12 : i32 to vector<2x1xi32>
    %31 = arith.addi %29, %30 : vector<2x1xi32>
    %32 = vector.broadcast %31 : vector<2x1xi32> to vector<2x128xi32>
    %33 = arith.cmpi eq, %3, %32 : vector<2x128xi32>
    %34 = arith.extui %33 : vector<2x128xi1> to vector<2x128xi32>
    %35 = arith.sitofp %34 : vector<2x128xi32> to vector<2x128xf32>
    %cst_13 = arith.constant dense<0.000000e+00> : vector<2x64xf32>
    %36 = tpu.matmul %35, %2, %cst_13 {dimension_numbers = #tpu.dot_dimension_numbers<[1], [0], [0], [1], [0, 0, 1, 1], [], []>} : vector<2x128xf32>, vector<128x64xf32>, vector<2x64xf32> -> vector<2x64xf32>
    %37 = arith.truncf %28 : vector<2x64xf32> to vector<2x64xbf16>
    %cst_14 = arith.constant dense<0.000000e+00> : vector<2x64xf32>
    %38 = tpu.matmul %37, %0, %cst_14 {dimension_numbers = #tpu.dot_dimension_numbers<[1], [0], [0], [1], [0, 0, 1, 1], [], []>} : vector<2x64xbf16>, vector<64x64xbf16>, vector<2x64xf32> -> vector<2x64xf32>
    %39 = arith.addf %36, %38 : vector<2x64xf32>
    %40 = math.tanh %39 : vector<2x64xf32>
    %c0_15 = arith.constant 0 : index
    %c0_16 = arith.constant 0 : index
    %41 = vector.load %arg0[%c0_15, %c0_16] : memref<2x8xi32, #tpu.memory_space<vmem>>, vector<2x1xi32>
    %42 = vector.broadcast %41 : vector<2x1xi32> to vector<2x128xi32>
    %43 = arith.cmpi eq, %3, %42 : vector<2x128xi32>
    %c0_17 = arith.constant 0 : index
    %c4 = arith.constant 4 : index
    %44 = vector.load %arg0[%c0_17, %c4] : memref<2x8xi32, #tpu.memory_space<vmem>>, vector<2x1xi32>
    %c64_i32_18 = arith.constant 64 : i32
    %45 = vector.broadcast %c64_i32_18 : i32 to vector<2x1xi32>
    %46 = arith.addi %44, %45 : vector<2x1xi32>
    %47 = vector.broadcast %46 : vector<2x1xi32> to vector<2x128xi32>
    %48 = arith.cmpi eq, %3, %47 : vector<2x128xi32>
    %49 = arith.ori %43, %48 : vector<2x128xi1>
    %50 = arith.extui %49 : vector<2x128xi1> to vector<2x128xi32>
    %51 = arith.sitofp %50 : vector<2x128xi32> to vector<2x128xf32>
    %cst_19 = arith.constant dense<0.000000e+00> : vector<2x64xf32>
    %52 = tpu.matmul %51, %2, %cst_19 {dimension_numbers = #tpu.dot_dimension_numbers<[1], [0], [0], [1], [0, 0, 1, 1], [], []>} : vector<2x128xf32>, vector<128x64xf32>, vector<2x64xf32> -> vector<2x64xf32>
    %53 = arith.truncf %40 : vector<2x64xf32> to vector<2x64xbf16>
    %cst_20 = arith.constant dense<0.000000e+00> : vector<2x64xf32>
    %54 = tpu.matmul %53, %0, %cst_20 {dimension_numbers = #tpu.dot_dimension_numbers<[1], [0], [0], [1], [0, 0, 1, 1], [], []>} : vector<2x64xbf16>, vector<64x64xbf16>, vector<2x64xf32> -> vector<2x64xf32>
    %55 = arith.addf %52, %54 : vector<2x64xf32>
    %56 = math.tanh %55 : vector<2x64xf32>
    %c0_21 = arith.constant 0 : index
    %c1 = arith.constant 1 : index
    %57 = vector.load %arg0[%c0_21, %c1] : memref<2x8xi32, #tpu.memory_space<vmem>>, vector<2x1xi32>
    %58 = vector.broadcast %57 : vector<2x1xi32> to vector<2x128xi32>
    %59 = arith.cmpi eq, %3, %58 : vector<2x128xi32>
    %c0_22 = arith.constant 0 : index
    %c3 = arith.constant 3 : index
    %60 = vector.load %arg0[%c0_22, %c3] : memref<2x8xi32, #tpu.memory_space<vmem>>, vector<2x1xi32>
    %c64_i32_23 = arith.constant 64 : i32
    %61 = vector.broadcast %c64_i32_23 : i32 to vector<2x1xi32>
    %62 = arith.addi %60, %61 : vector<2x1xi32>
    %63 = vector.broadcast %62 : vector<2x1xi32> to vector<2x128xi32>
    %64 = arith.cmpi eq, %3, %63 : vector<2x128xi32>
    %65 = arith.ori %59, %64 : vector<2x128xi1>
    %66 = arith.extui %65 : vector<2x128xi1> to vector<2x128xi32>
    %67 = arith.sitofp %66 : vector<2x128xi32> to vector<2x128xf32>
    %cst_24 = arith.constant dense<0.000000e+00> : vector<2x64xf32>
    %68 = tpu.matmul %67, %2, %cst_24 {dimension_numbers = #tpu.dot_dimension_numbers<[1], [0], [0], [1], [0, 0, 1, 1], [], []>} : vector<2x128xf32>, vector<128x64xf32>, vector<2x64xf32> -> vector<2x64xf32>
    %69 = arith.truncf %56 : vector<2x64xf32> to vector<2x64xbf16>
    %cst_25 = arith.constant dense<0.000000e+00> : vector<2x64xf32>
    %70 = tpu.matmul %69, %0, %cst_25 {dimension_numbers = #tpu.dot_dimension_numbers<[1], [0], [0], [1], [0, 0, 1, 1], [], []>} : vector<2x64xbf16>, vector<64x64xbf16>, vector<2x64xf32> -> vector<2x64xf32>
    %71 = arith.addf %68, %70 : vector<2x64xf32>
    %72 = math.tanh %71 : vector<2x64xf32>
    %c0_26 = arith.constant 0 : index
    %c2 = arith.constant 2 : index
    %73 = vector.load %arg0[%c0_26, %c2] : memref<2x8xi32, #tpu.memory_space<vmem>>, vector<2x1xi32>
    %74 = vector.broadcast %73 : vector<2x1xi32> to vector<2x128xi32>
    %75 = arith.cmpi eq, %3, %74 : vector<2x128xi32>
    %c0_27 = arith.constant 0 : index
    %c2_28 = arith.constant 2 : index
    %76 = vector.load %arg0[%c0_27, %c2_28] : memref<2x8xi32, #tpu.memory_space<vmem>>, vector<2x1xi32>
    %c64_i32_29 = arith.constant 64 : i32
    %77 = vector.broadcast %c64_i32_29 : i32 to vector<2x1xi32>
    %78 = arith.addi %76, %77 : vector<2x1xi32>
    %79 = vector.broadcast %78 : vector<2x1xi32> to vector<2x128xi32>
    %80 = arith.cmpi eq, %3, %79 : vector<2x128xi32>
    %81 = arith.ori %75, %80 : vector<2x128xi1>
    %82 = arith.extui %81 : vector<2x128xi1> to vector<2x128xi32>
    %83 = arith.sitofp %82 : vector<2x128xi32> to vector<2x128xf32>
    %cst_30 = arith.constant dense<0.000000e+00> : vector<2x64xf32>
    %84 = tpu.matmul %83, %2, %cst_30 {dimension_numbers = #tpu.dot_dimension_numbers<[1], [0], [0], [1], [0, 0, 1, 1], [], []>} : vector<2x128xf32>, vector<128x64xf32>, vector<2x64xf32> -> vector<2x64xf32>
    %85 = arith.truncf %72 : vector<2x64xf32> to vector<2x64xbf16>
    %cst_31 = arith.constant dense<0.000000e+00> : vector<2x64xf32>
    %86 = tpu.matmul %85, %0, %cst_31 {dimension_numbers = #tpu.dot_dimension_numbers<[1], [0], [0], [1], [0, 0, 1, 1], [], []>} : vector<2x64xbf16>, vector<64x64xbf16>, vector<2x64xf32> -> vector<2x64xf32>
    %87 = arith.addf %84, %86 : vector<2x64xf32>
    %88 = math.tanh %87 : vector<2x64xf32>
    %89 = arith.truncf %88 : vector<2x64xf32> to vector<2x64xbf16>
    %cst_32 = arith.constant dense<0.000000e+00> : vector<2x64xf32>
    %90 = tpu.matmul %89, %1, %cst_32 {dimension_numbers = #tpu.dot_dimension_numbers<[1], [0], [0], [1], [0, 0, 1, 1], [], []>} : vector<2x64xbf16>, vector<64x64xbf16>, vector<2x64xf32> -> vector<2x64xf32>
    %c0_33 = arith.constant 0 : index
    %c0_34 = arith.constant 0 : index
    %91 = vector.load %arg3[%c0_33, %c0_34] : memref<1x64xf32, #tpu.memory_space<vmem>>, vector<1x64xf32>
    %92 = vector.broadcast %91 : vector<1x64xf32> to vector<2x64xf32>
    %93 = arith.addf %90, %92 : vector<2x64xf32>
    %c0_35 = arith.constant 0 : index
    %c0_36 = arith.constant 0 : index
    %94 = vector.load %arg4[%c0_35, %c0_36] : memref<2x64xf32, #tpu.memory_space<vmem>>, vector<2x64xf32>
    %95 = arith.mulf %93, %94 : vector<2x64xf32>
    %c0_37 = arith.constant 0 : index
    %c0_38 = arith.constant 0 : index
    %96 = vector.load %arg5[%c0_37, %c0_38] : memref<2x64xf32, #tpu.memory_space<vmem>>, vector<2x64xf32>
    tpu.vector_store %arg5[%c0_37, %c0_38], %95 {strides = array<i32>} : memref<2x64xf32, #tpu.memory_space<vmem>>, vector<2x64xf32>,
    return
  }
}

</mosaic_0001>

<llo_original>
// kernel: proofreader_forward.1
$region0: #{proofreader_forward.1}
  #allocation0 [shape = 'u32[]', space=smem, size = 0x4, offset = 0x4, fixed_abs, tag = 'smem constant byte address 0x4 - core index']
  #allocation1 [shape = 'u32[144,128]{1,0:T(1,128)}', space=vmem, size = 0x12000, scoped, tag = 'internal scratch']
  %s0 = inlined_call_operand.vmem [shape: s32[2,8], index: 0, kind: input, shape index: {}]
  %s1 = inlined_call_operand.vmem [shape: f32[128,64], index: 1, kind: input, shape index: {}]
  %s2 = inlined_call_operand.vmem [shape: bf16[64,128], index: 2, kind: input, shape index: {}]
  %s3 = inlined_call_operand.vmem [shape: f32[1,64], index: 3, kind: input, shape index: {}]
  %s4 = inlined_call_operand.vmem [shape: f32[2,64], index: 4, kind: input, shape index: {}]
  %s5 = inlined_call_operand.hbm [shape: f32[2,64], index: 5, kind: output, shape index: {}]
  %s6 = sld [smem:[#allocation0]]
  $region30: #{proofreader_forward.1} parent=0
    _
  %s8 = ssub.s32 1, %s6
  %s9 = scalar_select 0, %s8, %s6
  $region1: #{proofreader_forward.1} parent=0
    #allocation2 [shape = 'u8[1024]{0}', space=vmem, size = 0x400, scoped, tag = 'output window, operand 0, single buffered']
    #allocation3 [shape = 's32[1]{0}', space=sflag, size = 0x4, scoped, tag = 'scoped memory for proofreader_forward.1']
    %10 = vsyncpa [#allocation3], 0
    // Predicated region
    $region2: #{proofreader_forward.1} parent=1 // pred_check
      _
    $region3: #{proofreader_forward.1} parent=1 // pred_check_branch
      %12 = sbr.rel (0) target = $region5
    $region4: #{proofreader_forward.1} parent=1 // pred_region
      _
    $region5: #{proofreader_forward.1} parent=1 // pred_fallthru
      _
    // Predicated region
    $region6: #{proofreader_forward.1} parent=1 // pred_check
      _
    $region7: #{proofreader_forward.1} parent=1 // pred_check_branch
      %14 = sbr.rel (0) target = $region9
    $region8: #{proofreader_forward.1} parent=1 // pred_region
      _
    $region9: #{proofreader_forward.1} parent=1 // pred_fallthru
      _
    // Predicated region
    $region10: #{proofreader_forward.1} parent=1 // pred_check
      _
    $region11: #{proofreader_forward.1} parent=1 // pred_check_branch
      %16 = sbr.rel (0) target = $region13
    $region12: #{proofreader_forward.1} parent=1 // pred_region
      _
    $region13: #{proofreader_forward.1} parent=1 // pred_fallthru
      _
    // Predicated region
    $region14: #{proofreader_forward.1} parent=1 // pred_check
      _
    $region15: #{proofreader_forward.1} parent=1 // pred_check_branch
      %18 = sbr.rel (0) target = $region17
    $region16: #{proofreader_forward.1} parent=1 // pred_region
      _
    $region17: #{proofreader_forward.1} parent=1 // pred_fallthru
      _
    // Predicated region
    $region18: #{proofreader_forward.1} parent=1 // pred_check
      _
    $region19: #{proofreader_forward.1} parent=1 // pred_check_branch
      %20 = sbr.rel (0) target = $region21
    $region20: #{proofreader_forward.1} parent=1 // pred_region
      _
    $region21: #{proofreader_forward.1} parent=1 // pred_fallthru
      _
    %v22 = vld [vmem:[%s2] sm:$0xf]
    %v23 = vld [vmem:[%s2 + $0x4] sm:$0xf]
    %v24 = vld [vmem:[%s2 + $0x8] sm:$0xf]
    %v25 = vld [vmem:[%s2 + $0xc] sm:$0xf]
    %v26 = vld [vmem:[%s2 + $0x10] sm:$0xf]
    %v27 = vld [vmem:[%s2 + $0x14] sm:$0xf]
    %v28 = vld [vmem:[%s2 + $0x18] sm:$0xf]
    %v29 = vld [vmem:[%s2 + $0x1c] sm:$0xf]
    %v30 = vld [vmem:[%s1] sm:$0xff]
    %v31 = vld [vmem:[%s1 + $0x8] sm:$0xff]
    %v32 = vld [vmem:[%s1 + $0x10] sm:$0xff]
    %v33 = vld [vmem:[%s1 + $0x18] sm:$0xff]
    %v34 = vld [vmem:[%s1 + $0x20] sm:$0xff]
    %v35 = vld [vmem:[%s1 + $0x28] sm:$0xff]
    %v36 = vld [vmem:[%s1 + $0x30] sm:$0xff]
    %v37 = vld [vmem:[%s1 + $0x38] sm:$0xff]
    %v38 = vld [vmem:[%s1 + $0x40] sm:$0xff]
    %v39 = vld [vmem:[%s1 + $0x48] sm:$0xff]
    %v40 = vld [vmem:[%s1 + $0x50] sm:$0xff]
    %v41 = vld [vmem:[%s1 + $0x58] sm:$0xff]
    %v42 = vld [vmem:[%s1 + $0x60] sm:$0xff]
    %v43 = vld [vmem:[%s1 + $0x68] sm:$0xff]
    %v44 = vld [vmem:[%s1 + $0x70] sm:$0xff]
    %v45 = vld [vmem:[%s1 + $0x78] sm:$0xff]
    %v46 = vlaneseq
    %v47 = vand.u32 %v46, 127
    %v48 = vld [vmem:[%s0] sm:$0x3]
    %v49 = vadd.s32 %v48, 64
    %50 = vset.pattern.permute.xlu0 7
    %51 = vperm.xlu0 %50, %v49
    %v52 = vpop.permute.xlu0 %51
    %vm53 = vcmp.eq.s32.totalorder %v47, %v52
    %v54 = vsel %vm53, 1, 0
    %v55 = vcvt.s32.f32 %v54
    %v64 = vunpack.c.l.b16 %v22
    %v65 = vunpack.c.l.b16 %v23
    %v66 = vunpack.c.l.b16 %v24
    %v67 = vunpack.c.l.b16 %v25
    %v68 = vunpack.c.l.b16 %v26
    %v69 = vunpack.c.l.b16 %v27
    %v70 = vunpack.c.l.b16 %v28
    %v71 = vunpack.c.l.b16 %v29
    %v72 = vpack.c.b16 %v65, %v64
    %v73 = vpack.c.b16 %v67, %v66
    %v74 = vpack.c.b16 %v69, %v68
    %v75 = vpack.c.b16 %v71, %v70
    %vm80 = vcmask 523264
    %v82 = vsel %vm80, 0, 0
    %84 = vmatprep.subr.bf16.mxu0 0
    %85 = vmatpush1.bf16.msra.mxu0 %v72
    %86 = vmatprep.subr.bf16.mxu0 0
    %87 = vmatpush1.bf16.msra.mxu0 %v73
    %88 = vmatprep.subr.bf16.mxu0 0
    %89 = vmatpush1.bf16.msra.mxu0 %v74
    %90 = vmatprep.subr.bf16.mxu0 0
    %91 = vmatpush1.bf16.msra.mxu0 %v75
    %92 = vmatprep.subr.bf16.mxu0 0
    %93 = vmatpush1.bf16.msra.mxu0 0
    %94 = vmatprep.subr.bf16.mxu0 0
    %95 = vmatpush1.bf16.msra.mxu0 0
    %96 = vmatprep.subr.bf16.mxu0 0
    %97 = vmatpush1.bf16.msra.mxu0 0
    %98 = vmatprep.subr.bf16.mxu0 0
    %99 = vmatpush1.bf16.msra.mxu0 0
    %100 = vmatprep.subr.bf16.mxu0 0
    %101 = vmatpush1.bf16.msra.mxu0 0
    %102 = vmatprep.subr.bf16.mxu0 0
    %103 = vmatpush1.bf16.msra.mxu0 0
    %104 = vmatprep.subr.bf16.mxu0 0
    %105 = vmatpush1.bf16.msra.mxu0 0
    %106 = vmatprep.subr.bf16.mxu0 0
    %107 = vmatpush1.bf16.msra.mxu0 0
    %108 = vmatprep.subr.bf16.mxu0 0
    %109 = vmatpush1.bf16.msra.mxu0 0
    %110 = vmatprep.subr.bf16.mxu0 0
    %111 = vmatpush1.bf16.msra.mxu0 0
    %112 = vmatprep.subr.bf16.mxu0 0
    %113 = vmatpush1.bf16.msra.mxu0 0
    %114 = vmatprep.subr.bf16.mxu0 0
    %115 = vmatpush1.bf16.msra.mxu0 0
    %116 = vmatprep.mubr.bf16.mxu0 0
    %117 = vmatmul.mubr.bf16.gmra.mrb[0].mxu0 %v82
    %v118 = vpop.f32.mrb[0].mxu0
    %v119 = vadd.f32 0.0, %v118
    %v120 = vpop.f32.mrb[0].mxu0
    %v121 = vpop.f32.mrb[0].mxu0
    %v122 = vpop.f32.mrb[0].mxu0
    %123 = vdwg.mxu0
    %124 = vmatprep.subr.mxu0 0.0
    %125 = vmatpush1.msra.mxu0 %v30
    %126 = vmatprep.subr.mxu0 0.0
    %127 = vmatpush1.msra.mxu0 %v31
    %128 = vmatprep.subr.mxu0 0.0
    %129 = vmatpush1.msra.mxu0 %v32
    %130 = vmatprep.subr.mxu0 0.0
    %131 = vmatpush1.msra.mxu0 %v33
    %132 = vmatprep.subr.mxu0 0.0
    %133 = vmatpush1.msra.mxu0 %v34
    %134 = vmatprep.subr.mxu0 0.0
    %135 = vmatpush1.msra.mxu0 %v35
    %136 = vmatprep.subr.mxu0 0.0
    %137 = vmatpush1.msra.mxu0 %v36
    %138 = vmatprep.subr.mxu0 0.0
    %139 = vmatpush1.msra.mxu0 %v37
    %140 = vmatprep.subr.mxu0 0.0
    %141 = vmatpush1.msra.mxu0 %v38
    %142 = vmatprep.subr.mxu0 0.0
    %143 = vmatpush1.msra.mxu0 %v39
    %144 = vmatprep.subr.mxu0 0.0
    %145 = vmatpush1.msra.mxu0 %v40
    %146 = vmatprep.subr.mxu0 0.0
    %147 = vmatpush1.msra.mxu0 %v41
    %148 = vmatprep.subr.mxu0 0.0
    %149 = vmatpush1.msra.mxu0 %v42
    %150 = vmatprep.subr.mxu0 0.0
    %151 = vmatpush1.msra.mxu0 %v43
    %152 = vmatprep.subr.mxu0 0.0
    %153 = vmatpush1.msra.mxu0 %v44
    %154 = vmatprep.subr.mxu0 0.0
    %155 = vmatpush1.msra.mxu0 %v45
    %156 = vmatprep.subr.mxu0 0.0
    %157 = vmatpush1.msra.mxu0 0.0
    %158 = vmatprep.subr.mxu0 0.0
    %159 = vmatpush1.msra.mxu0 0.0
    %160 = vmatprep.subr.mxu0 0.0
    %161 = vmatpush1.msra.mxu0 0.0
    %162 = vmatprep.subr.mxu0 0.0
    %163 = vmatpush1.msra.mxu0 0.0
    %164 = vmatprep.subr.mxu0 0.0
    %165 = vmatpush1.msra.mxu0 0.0
    %166 = vmatprep.subr.mxu0 0.0
    %167 = vmatpush1.msra.mxu0 0.0
    %168 = vmatprep.subr.mxu0 0.0
    %169 = vmatpush1.msra.mxu0 0.0
    %170 = vmatprep.subr.mxu0 0.0
    %171 = vmatpush1.msra.mxu0 0.0
    %172 = vmatprep.subr.mxu0 0.0
    %173 = vmatpush1.msra.mxu0 0.0
    %174 = vmatprep.subr.mxu0 0.0
    %175 = vmatpush1.msra.mxu0 0.0
    %176 = vmatprep.subr.mxu0 0.0
    %177 = vmatpush1.msra.mxu0 0.0
    %178 = vmatprep.subr.mxu0 0.0
    %179 = vmatpush1.msra.mxu0 0.0
    %180 = vmatprep.subr.mxu0 0.0
    %181 = vmatpush1.msra.mxu0 0.0
    %182 = vmatprep.subr.mxu0 0.0
    %183 = vmatpush1.msra.mxu0 0.0
    %184 = vmatprep.subr.mxu0 0.0
    %185 = vmatpush1.msra.mxu0 0.0
    %186 = vmatprep.subr.mxu0 0.0
    %187 = vmatpush1.msra.mxu0 0.0
    %188 = vmatprep.mubr.f32.mxu0 0.0
    %189 = vmatmul.mubr.f32.gmra.mrb[0].mxu0 %v55
    %v190 = vpop.f32.mrb[0].mxu0
    %v191 = vadd.f32 %v119, %v190
    %v192 = vpop.f32.mrb[0].mxu0
    %193 = vdwg.mxu0
    %v194 = vtanh.pop %v191
    %195 = vset.pattern.permute.xlu0 6
    %196 = vperm.xlu0 %195, %v49
    %v197 = vpop.permute.xlu0 %196
    %vm198 = vcmp.eq.s32.totalorder %v47, %v197
    %v199 = vsel %vm198, 1, 0
    %v200 = vcvt.s32.f32 %v199
    %v201 = vpack.c.bf16 %v194, %v194
    %v203 = vsel %vm80, %v201, 0
    %205 = vmatprep.subr.bf16.mxu0 0
    %206 = vmatpush1.bf16.msra.mxu0 %v72
    %207 = vmatprep.subr.bf16.mxu0 0
    %208 = vmatpush1.bf16.msra.mxu0 %v73
    %209 = vmatprep.subr.bf16.mxu0 0
    %210 = vmatpush1.bf16.msra.mxu0 %v74
    %211 = vmatprep.subr.bf16.mxu0 0
    %212 = vmatpush1.bf16.msra.mxu0 %v75
    %213 = vmatprep.subr.bf16.mxu0 0
    %214 = vmatpush1.bf16.msra.mxu0 0
    %215 = vmatprep.subr.bf16.mxu0 0
    %216 = vmatpush1.bf16.msra.mxu0 0
    %217 = vmatprep.subr.bf16.mxu0 0
    %218 = vmatpush1.bf16.msra.mxu0 0
    %219 = vmatprep.subr.bf16.mxu0 0
    %220 = vmatpush1.bf16.msra.mxu0 0
    %221 = vmatprep.subr.bf16.mxu0 0
    %222 = vmatpush1.bf16.msra.mxu0 0
    %223 = vmatprep.subr.bf16.mxu0 0
    %224 = vmatpush1.bf16.msra.mxu0 0
    %225 = vmatprep.subr.bf16.mxu0 0
    %226 = vmatpush1.bf16.msra.mxu0 0
    %227 = vmatprep.subr.bf16.mxu0 0
    %228 = vmatpush1.bf16.msra.mxu0 0
    %229 = vmatprep.subr.bf16.mxu0 0
    %230 = vmatpush1.bf16.msra.mxu0 0
    %231 = vmatprep.subr.bf16.mxu0 0
    %232 = vmatpush1.bf16.msra.mxu0 0
    %233 = vmatprep.subr.bf16.mxu0 0
    %234 = vmatpush1.bf16.msra.mxu0 0
    %235 = vmatprep.subr.bf16.mxu0 0
    %236 = vmatpush1.bf16.msra.mxu0 0
    %237 = vmatprep.mubr.bf16.mxu0 0
    %238 = vmatmul.mubr.bf16.gmra.mrb[0].mxu0 %v203
    %v239 = vpop.f32.mrb[0].mxu0
    %v240 = vadd.f32 0.0, %v239
    %v241 = vpop.f32.mrb[0].mxu0
    %v242 = vpop.f32.mrb[0].mxu0
    %v243 = vpop.f32.mrb[0].mxu0
    %244 = vdwg.mxu0
    %245 = vmatprep.subr.mxu0 0.0
    %246 = vmatpush1.msra.mxu0 %v30
    %247 = vmatprep.subr.mxu0 0.0
    %248 = vmatpush1.msra.mxu0 %v31
    %249 = vmatprep.subr.mxu0 0.0
    %250 = vmatpush1.msra.mxu0 %v32
    %251 = vmatprep.subr.mxu0 0.0
    %252 = vmatpush1.msra.mxu0 %v33
    %253 = vmatprep.subr.mxu0 0.0
    %254 = vmatpush1.msra.mxu0 %v34
    %255 = vmatprep.subr.mxu0 0.0
    %256 = vmatpush1.msra.mxu0 %v35
    %257 = vmatprep.subr.mxu0 0.0
    %258 = vmatpush1.msra.mxu0 %v36
    %259 = vmatprep.subr.mxu0 0.0
    %260 = vmatpush1.msra.mxu0 %v37
    %261 = vmatprep.subr.mxu0 0.0
    %262 = vmatpush1.msra.mxu0 %v38
    %263 = vmatprep.subr.mxu0 0.0
    %264 = vmatpush1.msra.mxu0 %v39
    %265 = vmatprep.subr.mxu0 0.0
    %266 = vmatpush1.msra.mxu0 %v40
    %267 = vmatprep.subr.mxu0 0.0
    %268 = vmatpush1.msra.mxu0 %v41
    %269 = vmatprep.subr.mxu0 0.0
    %270 = vmatpush1.msra.mxu0 %v42
    %271 = vmatprep.subr.mxu0 0.0
    %272 = vmatpush1.msra.mxu0 %v43
    %273 = vmatprep.subr.mxu0 0.0
    %274 = vmatpush1.msra.mxu0 %v44
    %275 = vmatprep.subr.mxu0 0.0
    %276 = vmatpush1.msra.mxu0 %v45
    %277 = vmatprep.subr.mxu0 0.0
    %278 = vmatpush1.msra.mxu0 0.0
    %279 = vmatprep.subr.mxu0 0.0
    %280 = vmatpush1.msra.mxu0 0.0
    %281 = vmatprep.subr.mxu0 0.0
    %282 = vmatpush1.msra.mxu0 0.0
    %283 = vmatprep.subr.mxu0 0.0
    %284 = vmatpush1.msra.mxu0 0.0
    %285 = vmatprep.subr.mxu0 0.0
    %286 = vmatpush1.msra.mxu0 0.0
    %287 = vmatprep.subr.mxu0 0.0
    %288 = vmatpush1.msra.mxu0 0.0
    %289 = vmatprep.subr.mxu0 0.0
    %290 = vmatpush1.msra.mxu0 0.0
    %291 = vmatprep.subr.mxu0 0.0
    %292 = vmatpush1.msra.mxu0 0.0
    %293 = vmatprep.subr.mxu0 0.0
    %294 = vmatpush1.msra.mxu0 0.0
    %295 = vmatprep.subr.mxu0 0.0
    %296 = vmatpush1.msra.mxu0 0.0
    %297 = vmatprep.subr.mxu0 0.0
    %298 = vmatpush1.msra.mxu0 0.0
    %299 = vmatprep.subr.mxu0 0.0
    %300 = vmatpush1.msra.mxu0 0.0
    %301 = vmatprep.subr.mxu0 0.0
    %302 = vmatpush1.msra.mxu0 0.0
    %303 = vmatprep.subr.mxu0 0.0
    %304 = vmatpush1.msra.mxu0 0.0
    %305 = vmatprep.subr.mxu0 0.0
    %306 = vmatpush1.msra.mxu0 0.0
    %307 = vmatprep.subr.mxu0 0.0
    %308 = vmatpush1.msra.mxu0 0.0
    %309 = vmatprep.mubr.f32.mxu0 0.0
    %310 = vmatmul.mubr.f32.gmra.mrb[0].mxu0 %v200
    %v311 = vpop.f32.mrb[0].mxu0
    %v312 = vadd.f32 %v240, %v311
    %v313 = vpop.f32.mrb[0].mxu0
    %314 = vdwg.mxu0
    %v315 = vtanh.pop %v312
    %316 = vset.pattern.permute.xlu0 5
    %317 = vperm.xlu0 %316, %v49
    %v318 = vpop.permute.xlu0 %317
    %vm319 = vcmp.eq.s32.totalorder %v47, %v318
    %v320 = vsel %vm319, 1, 0
    %v321 = vcvt.s32.f32 %v320
    %v322 = vpack.c.bf16 %v315, %v315
    %v324 = vsel %vm80, %v322, 0
    %326 = vmatprep.subr.bf16.mxu0 0
    %327 = vmatpush1.bf16.msra.mxu0 %v72
    %328 = vmatprep.subr.bf16.mxu0 0
    %329 = vmatpush1.bf16.msra.mxu0 %v73
    %330 = vmatprep.subr.bf16.mxu0 0
    %331 = vmatpush1.bf16.msra.mxu0 %v74
    %332 = vmatprep.subr.bf16.mxu0 0
    %333 = vmatpush1.bf16.msra.mxu0 %v75
    %334 = vmatprep.subr.bf16.mxu0 0
    %335 = vmatpush1.bf16.msra.mxu0 0
    %336 = vmatprep.subr.bf16.mxu0 0
    %337 = vmatpush1.bf16.msra.mxu0 0
    %338 = vmatprep.subr.bf16.mxu0 0
    %339 = vmatpush1.bf16.msra.mxu0 0
    %340 = vmatprep.subr.bf16.mxu0 0
    %341 = vmatpush1.bf16.msra.mxu0 0
    %342 = vmatprep.subr.bf16.mxu0 0
    %343 = vmatpush1.bf16.msra.mxu0 0
    %344 = vmatprep.subr.bf16.mxu0 0
    %345 = vmatpush1.bf16.msra.mxu0 0
    %346 = vmatprep.subr.bf16.mxu0 0
    %347 = vmatpush1.bf16.msra.mxu0 0
    %348 = vmatprep.subr.bf16.mxu0 0
    %349 = vmatpush1.bf16.msra.mxu0 0
    %350 = vmatprep.subr.bf16.mxu0 0
    %351 = vmatpush1.bf16.msra.mxu0 0
    %352 = vmatprep.subr.bf16.mxu0 0
    %353 = vmatpush1.bf16.msra.mxu0 0
    %354 = vmatprep.subr.bf16.mxu0 0
    %355 = vmatpush1.bf16.msra.mxu0 0
    %356 = vmatprep.subr.bf16.mxu0 0
    %357 = vmatpush1.bf16.msra.mxu0 0
    %358 = vmatprep.mubr.bf16.mxu0 0
    %359 = vmatmul.mubr.bf16.gmra.mrb[0].mxu0 %v324
    %v360 = vpop.f32.mrb[0].mxu0
    %v361 = vadd.f32 0.0, %v360
    %v362 = vpop.f32.mrb[0].mxu0
    %v363 = vpop.f32.mrb[0].mxu0
    %v364 = vpop.f32.mrb[0].mxu0
    %365 = vdwg.mxu0
    %366 = vmatprep.subr.mxu0 0.0
    %367 = vmatpush1.msra.mxu0 %v30
    %368 = vmatprep.subr.mxu0 0.0
    %369 = vmatpush1.msra.mxu0 %v31
    %370 = vmatprep.subr.mxu0 0.0
    %371 = vmatpush1.msra.mxu0 %v32
    %372 = vmatprep.subr.mxu0 0.0
    %373 = vmatpush1.msra.mxu0 %v33
    %374 = vmatprep.subr.mxu0 0.0
    %375 = vmatpush1.msra.mxu0 %v34
    %376 = vmatprep.subr.mxu0 0.0
    %377 = vmatpush1.msra.mxu0 %v35
    %378 = vmatprep.subr.mxu0 0.0
    %379 = vmatpush1.msra.mxu0 %v36
    %380 = vmatprep.subr.mxu0 0.0
    %381 = vmatpush1.msra.mxu0 %v37
    %382 = vmatprep.subr.mxu0 0.0
    %383 = vmatpush1.msra.mxu0 %v38
    %384 = vmatprep.subr.mxu0 0.0
    %385 = vmatpush1.msra.mxu0 %v39
    %386 = vmatprep.subr.mxu0 0.0
    %387 = vmatpush1.msra.mxu0 %v40
    %388 = vmatprep.subr.mxu0 0.0
    %389 = vmatpush1.msra.mxu0 %v41
    %390 = vmatprep.subr.mxu0 0.0
    %391 = vmatpush1.msra.mxu0 %v42
    %392 = vmatprep.subr.mxu0 0.0
    %393 = vmatpush1.msra.mxu0 %v43
    %394 = vmatprep.subr.mxu0 0.0
    %395 = vmatpush1.msra.mxu0 %v44
    %396 = vmatprep.subr.mxu0 0.0
    %397 = vmatpush1.msra.mxu0 %v45
    %398 = vmatprep.subr.mxu0 0.0
    %399 = vmatpush1.msra.mxu0 0.0
    %400 = vmatprep.subr.mxu0 0.0
    %401 = vmatpush1.msra.mxu0 0.0
    %402 = vmatprep.subr.mxu0 0.0
    %403 = vmatpush1.msra.mxu0 0.0
    %404 = vmatprep.subr.mxu0 0.0
    %405 = vmatpush1.msra.mxu0 0.0
    %406 = vmatprep.subr.mxu0 0.0
    %407 = vmatpush1.msra.mxu0 0.0
    %408 = vmatprep.subr.mxu0 0.0
    %409 = vmatpush1.msra.mxu0 0.0
    %410 = vmatprep.subr.mxu0 0.0
    %411 = vmatpush1.msra.mxu0 0.0
    %412 = vmatprep.subr.mxu0 0.0
    %413 = vmatpush1.msra.mxu0 0.0
    %414 = vmatprep.subr.mxu0 0.0
    %415 = vmatpush1.msra.mxu0 0.0
    %416 = vmatprep.subr.mxu0 0.0
    %417 = vmatpush1.msra.mxu0 0.0
    %418 = vmatprep.subr.mxu0 0.0
    %419 = vmatpush1.msra.mxu0 0.0
    %420 = vmatprep.subr.mxu0 0.0
    %421 = vmatpush1.msra.mxu0 0.0
    %422 = vmatprep.subr.mxu0 0.0
    %423 = vmatpush1.msra.mxu0 0.0
    %424 = vmatprep.subr.mxu0 0.0
    %425 = vmatpush1.msra.mxu0 0.0
    %426 = vmatprep.subr.mxu0 0.0
    %427 = vmatpush1.msra.mxu0 0.0
    %428 = vmatprep.subr.mxu0 0.0
    %429 = vmatpush1.msra.mxu0 0.0
    %430 = vmatprep.mubr.f32.mxu0 0.0
    %431 = vmatmul.mubr.f32.gmra.mrb[0].mxu0 %v321
    %v432 = vpop.f32.mrb[0].mxu0
    %v433 = vadd.f32 %v361, %v432
    %v434 = vpop.f32.mrb[0].mxu0
    %435 = vdwg.mxu0
    %v436 = vtanh.pop %v433
    %437 = vset.pattern.permute.xlu0 0
    %438 = vperm.xlu0 %437, %v48
    %v439 = vpop.permute.xlu0 %438
    %vm440 = vcmp.eq.s32.totalorder %v47, %v439
    %441 = vset.pattern.permute.xlu0 4
    %442 = vperm.xlu0 %441, %v49
    %v443 = vpop.permute.xlu0 %442
    %vm444 = vcmp.eq.s32.totalorder %v47, %v443
    %vm445 = vmor %vm440, %vm444
    %v446 = vsel %vm445, 1, 0
    %v447 = vcvt.s32.f32 %v446
    %v448 = vpack.c.bf16 %v436, %v436
    %v450 = vsel %vm80, %v448, 0
    %452 = vmatprep.subr.bf16.mxu0 0
    %453 = vmatpush1.bf16.msra.mxu0 %v72
    %454 = vmatprep.subr.bf16.mxu0 0
    %455 = vmatpush1.bf16.msra.mxu0 %v73
    %456 = vmatprep.subr.bf16.mxu0 0
    %457 = vmatpush1.bf16.msra.mxu0 %v74
    %458 = vmatprep.subr.bf16.mxu0 0
    %459 = vmatpush1.bf16.msra.mxu0 %v75
    %460 = vmatprep.subr.bf16.mxu0 0
    %461 = vmatpush1.bf16.msra.mxu0 0
    %462 = vmatprep.subr.bf16.mxu0 0
    %463 = vmatpush1.bf16.msra.mxu0 0
    %464 = vmatprep.subr.bf16.mxu0 0
    %465 = vmatpush1.bf16.msra.mxu0 0
    %466 = vmatprep.subr.bf16.mxu0 0
    %467 = vmatpush1.bf16.msra.mxu0 0
    %468 = vmatprep.subr.bf16.mxu0 0
    %469 = vmatpush1.bf16.msra.mxu0 0
    %470 = vmatprep.subr.bf16.mxu0 0
    %471 = vmatpush1.bf16.msra.mxu0 0
    %472 = vmatprep.subr.bf16.mxu0 0
    %473 = vmatpush1.bf16.msra.mxu0 0
    %474 = vmatprep.subr.bf16.mxu0 0
    %475 = vmatpush1.bf16.msra.mxu0 0
    %476 = vmatprep.subr.bf16.mxu0 0
    %477 = vmatpush1.bf16.msra.mxu0 0
    %478 = vmatprep.subr.bf16.mxu0 0
    %479 = vmatpush1.bf16.msra.mxu0 0
    %480 = vmatprep.subr.bf16.mxu0 0
    %481 = vmatpush1.bf16.msra.mxu0 0
    %482 = vmatprep.subr.bf16.mxu0 0
    %483 = vmatpush1.bf16.msra.mxu0 0
    %484 = vmatprep.mubr.bf16.mxu0 0
    %485 = vmatmul.mubr.bf16.gmra.mrb[0].mxu0 %v450
    %v486 = vpop.f32.mrb[0].mxu0
    %v487 = vadd.f32 0.0, %v486
    %v488 = vpop.f32.mrb[0].mxu0
    %v489 = vpop.f32.mrb[0].mxu0
    %v490 = vpop.f32.mrb[0].mxu0
    %491 = vdwg.mxu0
    %492 = vmatprep.subr.mxu0 0.0
    %493 = vmatpush1.msra.mxu0 %v30
    %494 = vmatprep.subr.mxu0 0.0
    %495 = vmatpush1.msra.mxu0 %v31
    %496 = vmatprep.subr.mxu0 0.0
    %497 = vmatpush1.msra.mxu0 %v32
    %498 = vmatprep.subr.mxu0 0.0
    %499 = vmatpush1.msra.mxu0 %v33
    %500 = vmatprep.subr.mxu0 0.0
    %501 = vmatpush1.msra.mxu0 %v34
    %502 = vmatprep.subr.mxu0 0.0
    %503 = vmatpush1.msra.mxu0 %v35
    %504 = vmatprep.subr.mxu0 0.0
    %505 = vmatpush1.msra.mxu0 %v36
    %506 = vmatprep.subr.mxu0 0.0
    %507 = vmatpush1.msra.mxu0 %v37
    %508 = vmatprep.subr.mxu0 0.0
    %509 = vmatpush1.msra.mxu0 %v38
    %510 = vmatprep.subr.mxu0 0.0
    %511 = vmatpush1.msra.mxu0 %v39
    %512 = vmatprep.subr.mxu0 0.0
    %513 = vmatpush1.msra.mxu0 %v40
    %514 = vmatprep.subr.mxu0 0.0
    %515 = vmatpush1.msra.mxu0 %v41
    %516 = vmatprep.subr.mxu0 0.0
    %517 = vmatpush1.msra.mxu0 %v42
    %518 = vmatprep.subr.mxu0 0.0
    %519 = vmatpush1.msra.mxu0 %v43
    %520 = vmatprep.subr.mxu0 0.0
    %521 = vmatpush1.msra.mxu0 %v44
    %522 = vmatprep.subr.mxu0 0.0
    %523 = vmatpush1.msra.mxu0 %v45
    %524 = vmatprep.subr.mxu0 0.0
    %525 = vmatpush1.msra.mxu0 0.0
    %526 = vmatprep.subr.mxu0 0.0
    %527 = vmatpush1.msra.mxu0 0.0
    %528 = vmatprep.subr.mxu0 0.0
    %529 = vmatpush1.msra.mxu0 0.0
    %530 = vmatprep.subr.mxu0 0.0
    %531 = vmatpush1.msra.mxu0 0.0
    %532 = vmatprep.subr.mxu0 0.0
    %533 = vmatpush1.msra.mxu0 0.0
    %534 = vmatprep.subr.mxu0 0.0
    %535 = vmatpush1.msra.mxu0 0.0
    %536 = vmatprep.subr.mxu0 0.0
    %537 = vmatpush1.msra.mxu0 0.0
    %538 = vmatprep.subr.mxu0 0.0
    %539 = vmatpush1.msra.mxu0 0.0
    %540 = vmatprep.subr.mxu0 0.0
    %541 = vmatpush1.msra.mxu0 0.0
    %542 = vmatprep.subr.mxu0 0.0
    %543 = vmatpush1.msra.mxu0 0.0
    %544 = vmatprep.subr.mxu0 0.0
    %545 = vmatpush1.msra.mxu0 0.0
    %546 = vmatprep.subr.mxu0 0.0
    %547 = vmatpush1.msra.mxu0 0.0
    %548 = vmatprep.subr.mxu0 0.0
    %549 = vmatpush1.msra.mxu0 0.0
    %550 = vmatprep.subr.mxu0 0.0
    %551 = vmatpush1.msra.mxu0 0.0
    %552 = vmatprep.subr.mxu0 0.0
    %553 = vmatpush1.msra.mxu0 0.0
    %554 = vmatprep.subr.mxu0 0.0
    %555 = vmatpush1.msra.mxu0 0.0
    %556 = vmatprep.mubr.f32.mxu0 0.0
    %557 = vmatmul.mubr.f32.gmra.mrb[0].mxu0 %v447
    %v558 = vpop.f32.mrb[0].mxu0
    %v559 = vadd.f32 %v487, %v558
    %v560 = vpop.f32.mrb[0].mxu0
    %561 = vdwg.mxu0
    %v562 = vtanh.pop %v559
    %563 = vset.pattern.permute.xlu0 1
    %564 = vperm.xlu0 %563, %v48
    %v565 = vpop.permute.xlu0 %564
    %vm566 = vcmp.eq.s32.totalorder %v47, %v565
    %567 = vset.pattern.permute.xlu0 3
    %568 = vperm.xlu0 %567, %v49
    %v569 = vpop.permute.xlu0 %568
    %vm570 = vcmp.eq.s32.totalorder %v47, %v569
    %vm571 = vmor %vm566, %vm570
    %v572 = vsel %vm571, 1, 0
    %v573 = vcvt.s32.f32 %v572
    %v574 = vpack.c.bf16 %v562, %v562
    %v576 = vsel %vm80, %v574, 0
    %578 = vmatprep.subr.bf16.mxu0 0
    %579 = vmatpush1.bf16.msra.mxu0 %v72
    %580 = vmatprep.subr.bf16.mxu0 0
    %581 = vmatpush1.bf16.msra.mxu0 %v73
    %582 = vmatprep.subr.bf16.mxu0 0
    %583 = vmatpush1.bf16.msra.mxu0 %v74
    %584 = vmatprep.subr.bf16.mxu0 0
    %585 = vmatpush1.bf16.msra.mxu0 %v75
    %586 = vmatprep.subr.bf16.mxu0 0
    %587 = vmatpush1.bf16.msra.mxu0 0
    %588 = vmatprep.subr.bf16.mxu0 0
    %589 = vmatpush1.bf16.msra.mxu0 0
    %590 = vmatprep.subr.bf16.mxu0 0
    %591 = vmatpush1.bf16.msra.mxu0 0
    %592 = vmatprep.subr.bf16.mxu0 0
    %593 = vmatpush1.bf16.msra.mxu0 0
    %594 = vmatprep.subr.bf16.mxu0 0
    %595 = vmatpush1.bf16.msra.mxu0 0
    %596 = vmatprep.subr.bf16.mxu0 0
    %597 = vmatpush1.bf16.msra.mxu0 0
    %598 = vmatprep.subr.bf16.mxu0 0
    %599 = vmatpush1.bf16.msra.mxu0 0
    %600 = vmatprep.subr.bf16.mxu0 0
    %601 = vmatpush1.bf16.msra.mxu0 0
    %602 = vmatprep.subr.bf16.mxu0 0
    %603 = vmatpush1.bf16.msra.mxu0 0
    %604 = vmatprep.subr.bf16.mxu0 0
    %605 = vmatpush1.bf16.msra.mxu0 0
    %606 = vmatprep.subr.bf16.mxu0 0
    %607 = vmatpush1.bf16.msra.mxu0 0
    %608 = vmatprep.subr.bf16.mxu0 0
    %609 = vmatpush1.bf16.msra.mxu0 0
    %610 = vmatprep.mubr.bf16.mxu0 0
    %611 = vmatmul.mubr.bf16.gmra.mrb[0].mxu0 %v576
    %v612 = vpop.f32.mrb[0].mxu0
    %v613 = vadd.f32 0.0, %v612
    %v614 = vpop.f32.mrb[0].mxu0
    %v615 = vpop.f32.mrb[0].mxu0
    %v616 = vpop.f32.mrb[0].mxu0
    %617 = vdwg.mxu0
    %618 = vmatprep.subr.mxu0 0.0
    %619 = vmatpush1.msra.mxu0 %v30
    %620 = vmatprep.subr.mxu0 0.0
    %621 = vmatpush1.msra.mxu0 %v31
    %622 = vmatprep.subr.mxu0 0.0
    %623 = vmatpush1.msra.mxu0 %v32
    %624 = vmatprep.subr.mxu0 0.0
    %625 = vmatpush1.msra.mxu0 %v33
    %626 = vmatprep.subr.mxu0 0.0
    %627 = vmatpush1.msra.mxu0 %v34
    %628 = vmatprep.subr.mxu0 0.0
    %629 = vmatpush1.msra.mxu0 %v35
    %630 = vmatprep.subr.mxu0 0.0
    %631 = vmatpush1.msra.mxu0 %v36
    %632 = vmatprep.subr.mxu0 0.0
    %633 = vmatpush1.msra.mxu0 %v37
    %634 = vmatprep.subr.mxu0 0.0
    %635 = vmatpush1.msra.mxu0 %v38
    %636 = vmatprep.subr.mxu0 0.0
    %637 = vmatpush1.msra.mxu0 %v39
    %638 = vmatprep.subr.mxu0 0.0
    %639 = vmatpush1.msra.mxu0 %v40
    %640 = vmatprep.subr.mxu0 0.0
    %641 = vmatpush1.msra.mxu0 %v41
    %642 = vmatprep.subr.mxu0 0.0
    %643 = vmatpush1.msra.mxu0 %v42
    %644 = vmatprep.subr.mxu0 0.0
    %645 = vmatpush1.msra.mxu0 %v43
    %646 = vmatprep.subr.mxu0 0.0
    %647 = vmatpush1.msra.mxu0 %v44
    %648 = vmatprep.subr.mxu0 0.0
    %649 = vmatpush1.msra.mxu0 %v45
    %650 = vmatprep.subr.mxu0 0.0
    %651 = vmatpush1.msra.mxu0 0.0
    %652 = vmatprep.subr.mxu0 0.0
    %653 = vmatpush1.msra.mxu0 0.0
    %654 = vmatprep.subr.mxu0 0.0
    %655 = vmatpush1.msra.mxu0 0.0
    %656 = vmatprep.subr.mxu0 0.0
    %657 = vmatpush1.msra.mxu0 0.0
    %658 = vmatprep.subr.mxu0 0.0
    %659 = vmatpush1.msra.mxu0 0.0
    %660 = vmatprep.subr.mxu0 0.0
    %661 = vmatpush1.msra.mxu0 0.0
    %662 = vmatprep.subr.mxu0 0.0
    %663 = vmatpush1.msra.mxu0 0.0
    %664 = vmatprep.subr.mxu0 0.0
    %665 = vmatpush1.msra.mxu0 0.0
    %666 = vmatprep.subr.mxu0 0.0
    %667 = vmatpush1.msra.mxu0 0.0
    %668 = vmatprep.subr.mxu0 0.0
    %669 = vmatpush1.msra.mxu0 0.0
    %670 = vmatprep.subr.mxu0 0.0
    %671 = vmatpush1.msra.mxu0 0.0
    %672 = vmatprep.subr.mxu0 0.0
    %673 = vmatpush1.msra.mxu0 0.0
    %674 = vmatprep.subr.mxu0 0.0
    %675 = vmatpush1.msra.mxu0 0.0
    %676 = vmatprep.subr.mxu0 0.0
    %677 = vmatpush1.msra.mxu0 0.0
    %678 = vmatprep.subr.mxu0 0.0
    %679 = vmatpush1.msra.mxu0 0.0
    %680 = vmatprep.subr.mxu0 0.0
    %681 = vmatpush1.msra.mxu0 0.0
    %682 = vmatprep.mubr.f32.mxu0 0.0
    %683 = vmatmul.mubr.f32.gmra.mrb[0].mxu0 %v573
    %v684 = vpop.f32.mrb[0].mxu0
    %v685 = vadd.f32 %v613, %v684
    %v686 = vpop.f32.mrb[0].mxu0
    %687 = vdwg.mxu0
    %v688 = vtanh.pop %v685
    %689 = vset.pattern.permute.xlu0 2
    %690 = vperm.xlu0 %689, %v48
    %v691 = vpop.permute.xlu0 %690
    %vm692 = vcmp.eq.s32.totalorder %v47, %v691
    %693 = vset.pattern.permute.xlu0 2
    %694 = vperm.xlu0 %693, %v49
    %v695 = vpop.permute.xlu0 %694
    %vm696 = vcmp.eq.s32.totalorder %v47, %v695
    %vm697 = vmor %vm692, %vm696
    %v698 = vsel %vm697, 1, 0
    %v699 = vcvt.s32.f32 %v698
    %v700 = vpack.c.bf16 %v688, %v688
    %v702 = vsel %vm80, %v700, 0
    %704 = vmatprep.subr.bf16.mxu0 0
    %705 = vmatpush1.bf16.msra.mxu0 %v72
    %706 = vmatprep.subr.bf16.mxu0 0
    %707 = vmatpush1.bf16.msra.mxu0 %v73
    %708 = vmatprep.subr.bf16.mxu0 0
    %709 = vmatpush1.bf16.msra.mxu0 %v74
    %710 = vmatprep.subr.bf16.mxu0 0
    %711 = vmatpush1.bf16.msra.mxu0 %v75
    %712 = vmatprep.subr.bf16.mxu0 0
    %713 = vmatpush1.bf16.msra.mxu0 0
    %714 = vmatprep.subr.bf16.mxu0 0
    %715 = vmatpush1.bf16.msra.mxu0 0
    %716 = vmatprep.subr.bf16.mxu0 0
    %717 = vmatpush1.bf16.msra.mxu0 0
    %718 = vmatprep.subr.bf16.mxu0 0
    %719 = vmatpush1.bf16.msra.mxu0 0
    %720 = vmatprep.subr.bf16.mxu0 0
    %721 = vmatpush1.bf16.msra.mxu0 0
    %722 = vmatprep.subr.bf16.mxu0 0
    %723 = vmatpush1.bf16.msra.mxu0 0
    %724 = vmatprep.subr.bf16.mxu0 0
    %725 = vmatpush1.bf16.msra.mxu0 0
    %726 = vmatprep.subr.bf16.mxu0 0
    %727 = vmatpush1.bf16.msra.mxu0 0
    %728 = vmatprep.subr.bf16.mxu0 0
    %729 = vmatpush1.bf16.msra.mxu0 0
    %730 = vmatprep.subr.bf16.mxu0 0
    %731 = vmatpush1.bf16.msra.mxu0 0
    %732 = vmatprep.subr.bf16.mxu0 0
    %733 = vmatpush1.bf16.msra.mxu0 0
    %734 = vmatprep.subr.bf16.mxu0 0
    %735 = vmatpush1.bf16.msra.mxu0 0
    %736 = vmatprep.mubr.bf16.mxu0 0
    %737 = vmatmul.mubr.bf16.gmra.mrb[0].mxu0 %v702
    %v738 = vpop.f32.mrb[0].mxu0
    %v739 = vadd.f32 0.0, %v738
    %v740 = vpop.f32.mrb[0].mxu0
    %v741 = vpop.f32.mrb[0].mxu0
    %v742 = vpop.f32.mrb[0].mxu0
    %743 = vdwg.mxu0
    %744 = vmatprep.subr.mxu0 0.0
    %745 = vmatpush1.msra.mxu0 %v30
    %746 = vmatprep.subr.mxu0 0.0
    %747 = vmatpush1.msra.mxu0 %v31
    %748 = vmatprep.subr.mxu0 0.0
    %749 = vmatpush1.msra.mxu0 %v32
    %750 = vmatprep.subr.mxu0 0.0
    %751 = vmatpush1.msra.mxu0 %v33
    %752 = vmatprep.subr.mxu0 0.0
    %753 = vmatpush1.msra.mxu0 %v34
    %754 = vmatprep.subr.mxu0 0.0
    %755 = vmatpush1.msra.mxu0 %v35
    %756 = vmatprep.subr.mxu0 0.0
    %757 = vmatpush1.msra.mxu0 %v36
    %758 = vmatprep.subr.mxu0 0.0
    %759 = vmatpush1.msra.mxu0 %v37
    %760 = vmatprep.subr.mxu0 0.0
    %761 = vmatpush1.msra.mxu0 %v38
    %762 = vmatprep.subr.mxu0 0.0
    %763 = vmatpush1.msra.mxu0 %v39
    %764 = vmatprep.subr.mxu0 0.0
    %765 = vmatpush1.msra.mxu0 %v40
    %766 = vmatprep.subr.mxu0 0.0
    %767 = vmatpush1.msra.mxu0 %v41
    %768 = vmatprep.subr.mxu0 0.0
    %769 = vmatpush1.msra.mxu0 %v42
    %770 = vmatprep.subr.mxu0 0.0
    %771 = vmatpush1.msra.mxu0 %v43
    %772 = vmatprep.subr.mxu0 0.0
    %773 = vmatpush1.msra.mxu0 %v44
    %774 = vmatprep.subr.mxu0 0.0
    %775 = vmatpush1.msra.mxu0 %v45
    %776 = vmatprep.subr.mxu0 0.0
    %777 = vmatpush1.msra.mxu0 0.0
    %778 = vmatprep.subr.mxu0 0.0
    %779 = vmatpush1.msra.mxu0 0.0
    %780 = vmatprep.subr.mxu0 0.0
    %781 = vmatpush1.msra.mxu0 0.0
    %782 = vmatprep.subr.mxu0 0.0
    %783 = vmatpush1.msra.mxu0 0.0
    %784 = vmatprep.subr.mxu0 0.0
    %785 = vmatpush1.msra.mxu0 0.0
    %786 = vmatprep.subr.mxu0 0.0
    %787 = vmatpush1.msra.mxu0 0.0
    %788 = vmatprep.subr.mxu0 0.0
    %789 = vmatpush1.msra.mxu0 0.0
    %790 = vmatprep.subr.mxu0 0.0
    %791 = vmatpush1.msra.mxu0 0.0
    %792 = vmatprep.subr.mxu0 0.0
    %793 = vmatpush1.msra.mxu0 0.0
    %794 = vmatprep.subr.mxu0 0.0
    %795 = vmatpush1.msra.mxu0 0.0
    %796 = vmatprep.subr.mxu0 0.0
    %797 = vmatpush1.msra.mxu0 0.0
    %798 = vmatprep.subr.mxu0 0.0
    %799 = vmatpush1.msra.mxu0 0.0
    %800 = vmatprep.subr.mxu0 0.0
    %801 = vmatpush1.msra.mxu0 0.0
    %802 = vmatprep.subr.mxu0 0.0
    %803 = vmatpush1.msra.mxu0 0.0
    %804 = vmatprep.subr.mxu0 0.0
    %805 = vmatpush1.msra.mxu0 0.0
    %806 = vmatprep.subr.mxu0 0.0
    %807 = vmatpush1.msra.mxu0 0.0
    %808 = vmatprep.mubr.f32.mxu0 0.0
    %809 = vmatmul.mubr.f32.gmra.mrb[0].mxu0 %v699
    %v810 = vpop.f32.mrb[0].mxu0
    %v811 = vadd.f32 %v739, %v810
    %v812 = vpop.f32.mrb[0].mxu0
    %813 = vdwg.mxu0
    %v814 = vtanh.pop %v811
    %v815 = vpack.c.bf16 %v814, %v814
    %v816 = vld [vmem:[%s3] sm:$0x1]
    %v818 = vlaneseq
    %v819 = vshrl.u32 %v818, 7
    %v820 = vsub.s32 0, %v819
    %v821 = vrot.slane %v816, %v820
    %823 = vrot.lane.b32.xlu0 %v72, 64
    %v824 = vpop.permute.xlu0 %823
    %825 = vrot.lane.b32.xlu0 %v73, 64
    %v826 = vpop.permute.xlu0 %825
    %827 = vrot.lane.b32.xlu0 %v74, 64
    %v828 = vpop.permute.xlu0 %827
    %829 = vrot.lane.b32.xlu0 %v75, 64
    %v830 = vpop.permute.xlu0 %829
    %v836 = vsel %vm80, %v815, 0
    %838 = vmatprep.subr.bf16.mxu0 0
    %839 = vmatpush1.bf16.msra.mxu0 %v824
    %840 = vmatprep.subr.bf16.mxu0 0
    %841 = vmatpush1.bf16.msra.mxu0 %v826
    %842 = vmatprep.subr.bf16.mxu0 0
    %843 = vmatpush1.bf16.msra.mxu0 %v828
    %844 = vmatprep.subr.bf16.mxu0 0
    %845 = vmatpush1.bf16.msra.mxu0 %v830
    %846 = vmatprep.subr.bf16.mxu0 0
    %847 = vmatpush1.bf16.msra.mxu0 0
    %848 = vmatprep.subr.bf16.mxu0 0
    %849 = vmatpush1.bf16.msra.mxu0 0
    %850 = vmatprep.subr.bf16.mxu0 0
    %851 = vmatpush1.bf16.msra.mxu0 0
    %852 = vmatprep.subr.bf16.mxu0 0
    %853 = vmatpush1.bf16.msra.mxu0 0
    %854 = vmatprep.subr.bf16.mxu0 0
    %855 = vmatpush1.bf16.msra.mxu0 0
    %856 = vmatprep.subr.bf16.mxu0 0
    %857 = vmatpush1.bf16.msra.mxu0 0
    %858 = vmatprep.subr.bf16.mxu0 0
    %859 = vmatpush1.bf16.msra.mxu0 0
    %860 = vmatprep.subr.bf16.mxu0 0
    %861 = vmatpush1.bf16.msra.mxu0 0
    %862 = vmatprep.subr.bf16.mxu0 0
    %863 = vmatpush1.bf16.msra.mxu0 0
    %864 = vmatprep.subr.bf16.mxu0 0
    %865 = vmatpush1.bf16.msra.mxu0 0
    %866 = vmatprep.subr.bf16.mxu0 0
    %867 = vmatpush1.bf16.msra.mxu0 0
    %868 = vmatprep.subr.bf16.mxu0 0
    %869 = vmatpush1.bf16.msra.mxu0 0
    %870 = vmatprep.mubr.bf16.mxu0 0
    %871 = vmatmul.mubr.bf16.gmra.mrb[0].mxu0 %v836
    %v872 = vpop.f32.mrb[0].mxu0
    %v873 = vadd.f32 %v821, %v872
    %v874 = vpop.f32.mrb[0].mxu0
    %v875 = vpop.f32.mrb[0].mxu0
    %v876 = vpop.f32.mrb[0].mxu0
    %877 = vdwg.mxu0
    %v878 = vld [vmem:[%s4] sm:$0x3]
    %v879 = vmul.f32 %v873, %v878
    %vm880 = vcmask 517120
    %881 = vst.msk [vmem:[#allocation2] sm:$0x3] %vm880, %v879
    // Predicated region
    $region22: #{proofreader_forward.1} parent=1 // pred_check
      _
    $region23: #{proofreader_forward.1} parent=1 // pred_check_branch
      %883 = sbr.rel (0) target = $region25
    $region24: #{proofreader_forward.1} parent=1 // pred_region
      %s885 = ssub.s32 32, 32
      %886 = vsyncadd [#allocation3], %s885
      %s888 = sshll.u32 [#allocation2], 4
      %s889 = int_to_ptr.vmem [resolvable:$true] %s888
      %891 = dma.vmem_to_hbm [thread:$0]  %s889, 32, %s5, [#allocation3]
    $region25: #{proofreader_forward.1} parent=1 // pred_fallthru
      _
    // Predicated region
    $region26: #{proofreader_forward.1} parent=1 // pred_check
      _
    $region27: #{proofreader_forward.1} parent=1 // pred_check_branch
      %893 = sbr.rel (0) target = $region29
    $region28: #{proofreader_forward.1} parent=1 // pred_region
      %894 = dma.done [#allocation3], 32
    $region29: #{proofreader_forward.1} parent=1 // pred_fallthru
      _
    %895 = vsyncpa [#allocation3], 1

</llo_original>
